<compile_context>
chip_gen: v7x
topology: tpu7x:2x2x1
jax: 0.10.0
libtpu: 0.0.40
codegen_flags: <defaults>
</compile_context>

<pallas_src>
import functools

import numpy as np
import jax
import jax.numpy as jnp
from jax.experimental import pallas as pl
from jax.experimental.pallas import tpu as pltpu


_HAS_INKERNEL_PRNG = hasattr(pltpu, "prng_seed") and hasattr(pltpu, "stateful_normal")


def _round_up(x: int, m: int) -> int:
    return ((x + m - 1) // m) * m


def _cdiv(a: int, b: int) -> int:
    return (a + b - 1) // b


# ----------------------------------------------------------------------------
# Kernel bodies
# ----------------------------------------------------------------------------
def _accumulate(x_ref, w_ref, acc_ref):
    """acc += x_tile @ fused_weight_tile (f32 accumulation on the MXU)."""
    k = pl.program_id(1)

    @pl.when(k == 0)
    def _init():
        acc_ref[...] = jnp.zeros_like(acc_ref)

    lhs = x_ref[...]
    if lhs.dtype != w_ref.dtype:          # opt-in bf16 MXU path (f32 accumulation)
        lhs = lhs.astype(w_ref.dtype)
    acc_ref[...] += jnp.dot(lhs, w_ref[...], preferred_element_type=jnp.float32)


def _finalize(acc_ref, b_ref, eps, z_ref, out_p):
    """Split mu/log_var from the fused accumulator and reparameterize."""
    y = acc_ref[...] + b_ref[...]         # (TB, 2*OUT_P), bias broadcast over rows
    mu = y[:, :out_p]                     # static, 128-lane-aligned slices
    log_var = y[:, out_p:]
    sig = jnp.exp(0.5 * log_var)          # EUP exp
    z_ref[...] = (mu + sig * eps).astype(z_ref.dtype)   # lane-dense full-width store


def _vae_kernel_eps(x_ref, w_ref, b_ref, eps_ref, z_ref, acc_ref, *, out_p):
    """Deterministic variant: eps streamed from HBM (used for exact testing)."""
    _accumulate(x_ref, w_ref, acc_ref)

    @pl.when(pl.program_id(1) == pl.num_programs(1) - 1)
    def _done():
        _finalize(acc_ref, b_ref, eps_ref[...], z_ref, out_p)


def _vae_kernel_prng(seed_ref, x_ref, w_ref, b_ref, z_ref, acc_ref, *, out_p):
    """Sampling variant: eps drawn in-kernel (no eps HBM stream)."""
    _accumulate(x_ref, w_ref, acc_ref)

    @pl.when(pl.program_id(1) == pl.num_programs(1) - 1)
    def _done():
        # Per-batch-tile seed: distinct stream per tile, seed is data (no recompiles).
        pltpu.prng_seed(seed_ref[0] + pl.program_id(0))
        eps = pltpu.stateful_normal(z_ref.shape, jnp.float32)
        _finalize(acc_ref, b_ref, eps, z_ref, out_p)


# ----------------------------------------------------------------------------
# Wrapper
# ----------------------------------------------------------------------------
def _pack_params(w_mu, w_lv, b_mu, b_lv, in_p, out_p, w_dtype):
    IN, OUT = w_mu.shape
    if in_p != IN or out_p != OUT:
        pad = ((0, in_p - IN), (0, out_p - OUT))
        w_mu = jnp.pad(w_mu, pad)
        w_lv = jnp.pad(w_lv, pad)
    if out_p != OUT:
        b_mu = jnp.pad(b_mu, (0, out_p - OUT))
        b_lv = jnp.pad(b_lv, (0, out_p - OUT))
    w = jnp.concatenate([w_mu, w_lv], axis=1).astype(w_dtype)      # (IN_P, 2*OUT_P)
    b = jnp.concatenate([b_mu, b_lv]).reshape(1, 2 * out_p).astype(jnp.float32)
    return w, b


def _vae_forward(x, w_mu, b_mu, w_lv, b_lv, *, eps=None, seed=None, noise_key=None,
                 block_rows: int = 1024,
                 weight_budget_bytes: int = 12 << 20,
                 vmem_budget_bytes: int = 28 << 20,
                 use_bf16_matmul: bool = False):
    """z = (x@W_mu+b_mu) + exp(0.5*(x@W_lv+b_lv)) * eps, fused in one Pallas kernel.

    Exactly one of `eps` (streamed noise), `seed` (in-kernel TPU PRNG) or
    `noise_key` (host noise drawn pre-padded) must be provided.
    """
    assert sum(v is not None for v in (eps, seed, noise_key)) == 1
    B, IN = x.shape
    OUT = w_mu.shape[1]
    assert w_mu.shape == (IN, OUT) and w_lv.shape == (IN, OUT)
    assert b_mu.shape == (OUT,) and b_lv.shape == (OUT,)

    w_dtype = jnp.bfloat16 if use_bf16_matmul else x.dtype
    w_itemsize = np.dtype(w_dtype).itemsize
    x_itemsize = np.dtype(x.dtype).itemsize

    out_p = _round_up(OUT, 128)              # lane-dense output / fused-weight width
    w2 = 2 * out_p

    # ---- K (IN) tiling: keep the (double-buffered) fused weight under budget ----
    tk_budget = max(128, (weight_budget_bytes // (2 * w_itemsize * w2)) // 128 * 128)
    if IN <= tk_budget:
        tk, in_p = IN, IN                    # weight fully resident, grid_k == 1
    else:
        tk = tk_budget
        in_p = _round_up(IN, tk)
    grid_k = in_p // tk

    # ---- batch tile from the remaining VMEM budget ----
    weight_bytes = 2 * tk * w2 * w_itemsize + 2 * w2 * 4     # dbl-buffered W + b
    per_row = (2 * tk * x_itemsize                           # x tile (dbl-buffered)
               + 2 * out_p * 4 * 2                           # z out (dbl-buffered)
               + (2 * out_p * 4 * 2 if eps is not None or noise_key is not None else 0)
               + w2 * 4                                      # f32 accumulator scratch
               + 6 * out_p * 4)                              # epilogue temporaries
    rows = (vmem_budget_bytes - weight_bytes) // per_row
    tb_max = min(_round_up(block_rows, 8), max(8, (rows // 8) * 8))
    n_b = _cdiv(B, tb_max)
    if B >= 16:
        n_b = max(n_b, 2)          # v7x: >= 2 grid steps so both TensorCores get work
    tb = min(tb_max, _round_up(_cdiv(B, n_b), 8))
    grid_b = _cdiv(B, tb)
    b_p = grid_b * tb              # batch padding <= 7 rows beyond ceil-split

    # ---- pad activations only when needed (no-op on aligned shapes) ----
    if b_p != B or in_p != IN:
        x = jnp.pad(x, ((0, b_p - B), (0, in_p - IN)))
    w, b = _pack_params(w_mu, w_lv, b_mu, b_lv, in_p, out_p, w_dtype)

    if noise_key is not None:      # draw pre-padded -> no extra pad pass over eps
        eps_arr = jax.random.normal(noise_key, (b_p, out_p), dtype=jnp.float32)
    elif eps is not None:
        eps_arr = eps
        if eps_arr.shape != (b_p, out_p):
            eps_arr = jnp.pad(eps_arr, ((0, b_p - eps_arr.shape[0]),
                                        (0, out_p - eps_arr.shape[1])))
    else:
        eps_arr = None             # in-kernel PRNG

    grid = (grid_b, grid_k)        # reduction (K) axis last
    out_shape = jax.ShapeDtypeStruct((b_p, out_p), x.dtype)
    scratch = [pltpu.VMEM((tb, w2), jnp.float32)]

    vmem_footprint = weight_bytes + tb * per_row
    compiler_params = pltpu.CompilerParams(
        dimension_semantics=("parallel", "arbitrary"),
        vmem_limit_bytes=int(min(64 << 20, max(32 << 20, vmem_footprint + (8 << 20)))),
    )
    cost = pl.CostEstimate(      # true (unpadded) work, per review note
        flops=2 * B * IN * 2 * OUT + 4 * B * OUT,
        transcendentals=B * OUT * (1 if eps_arr is not None else 4),
        bytes_accessed=(x_itemsize * B * IN + w_itemsize * IN * 2 * OUT
                        + 4 * 2 * OUT + 4 * B * OUT
                        + (4 * B * OUT if eps_arr is not None else 0)),
    )

    if eps_arr is None:
        seed_arr = jnp.asarray(seed, dtype=jnp.int32).reshape((1,))
        grid_spec = pltpu.PrefetchScalarGridSpec(
            num_scalar_prefetch=1,
            grid=grid,
            in_specs=[
                pl.BlockSpec((tb, tk), lambda i, k, s: (i, k)),   # x tile (pipelined)
                pl.BlockSpec((tk, w2), lambda i, k, s: (k, 0)),   # fused W_mu|W_lv
                pl.BlockSpec((1, w2), lambda i, k, s: (0, 0)),    # fused bias
            ],
            out_specs=pl.BlockSpec((tb, out_p), lambda i, k, s: (i, 0)),
            scratch_shapes=scratch,
        )
        z_p = pl.pallas_call(
            functools.partial(_vae_kernel_prng, out_p=out_p),
            out_shape=out_shape, grid_spec=grid_spec,
            compiler_params=compiler_params, cost_estimate=cost,
        )(seed_arr, x, w, b)
    else:
        grid_spec = pltpu.PrefetchScalarGridSpec(
            num_scalar_prefetch=0,
            grid=grid,
            in_specs=[
                pl.BlockSpec((tb, tk), lambda i, k: (i, k)),      # x tile
                pl.BlockSpec((tk, w2), lambda i, k: (k, 0)),      # fused W_mu|W_lv
                pl.BlockSpec((1, w2), lambda i, k: (0, 0)),       # fused bias
                pl.BlockSpec((tb, out_p), lambda i, k: (i, 0)),   # eps tile
            ],
            out_specs=pl.BlockSpec((tb, out_p), lambda i, k: (i, 0)),
            scratch_shapes=scratch,
        )
        z_p = pl.pallas_call(
            functools.partial(_vae_kernel_eps, out_p=out_p),
            out_shape=out_shape, grid_spec=grid_spec,
            compiler_params=compiler_params, cost_estimate=cost,
        )(x, w, b, eps_arr)

    if (b_p, out_p) != (B, OUT):
        z_p = z_p[:B, :OUT]
    return z_p


def vae_layer(x, w_mu, b_mu, w_lv, b_lv, eps, **kw):
    """Deterministic VAELayer forward given externally drawn eps ~ N(0,1)."""
    return _vae_forward(x, w_mu, b_mu, w_lv, b_lv, eps=eps, **kw)


def vae_layer_sample(x, w_mu, b_mu, w_lv, b_lv, seed=0, **kw):
    """Module-faithful VAELayer forward: draws eps ~ N(0,1) in-kernel with the TPU
    hardware PRNG (removes the eps HBM stream).  Falls back to host-side noise if
    the stateful PRNG path is unavailable in this environment."""
    if _HAS_INKERNEL_PRNG:
        try:
            z = _vae_forward(x, w_mu, b_mu, w_lv, b_lv, seed=seed, **kw)
            return jax.block_until_ready(z)
        except Exception:
            # TODO(synk): drop this fallback once pltpu.stateful_normal lowering is
            # verified on every deployment target / jax version in use.
            pass
    key = jax.random.PRNGKey(seed)
    return _vae_forward(x, w_mu, b_mu, w_lv, b_lv, noise_key=key, **kw)


# ----------------------------------------------------------------------------
# Self-test
# ----------------------------------------------------------------------------
if __name__ == "__main__":
    root = jax.random.PRNGKey(0)
    k_x, k_wm, k_bm, k_wl, k_bl, k_eps, k_x2, k_w2m, k_w2l, k_eps2 = jax.random.split(root, 10)

    # --- Test A: small shapes, single batch tile, lane-padded OUT, resident weight ---
    B, IN, OUT = 8, 32, 64
    x = jax.random.normal(k_x, (B, IN), dtype=jnp.float32)
    w_mu = 0.1 * jax.random.normal(k_wm, (IN, OUT), dtype=jnp.float32)
    b_mu = 0.1 * jax.random.normal(k_bm, (OUT,), dtype=jnp.float32)
    w_lv = 0.05 * jax.random.normal(k_wl, (IN, OUT), dtype=jnp.float32)
    b_lv = 0.05 * jax.random.normal(k_bl, (OUT,), dtype=jnp.float32)
    eps = jax.random.normal(k_eps, (B, OUT), dtype=jnp.float32)

    z = jax.block_until_ready(vae_layer(x, w_mu, b_mu, w_lv, b_lv, eps))
    z_ref = (x @ w_mu + b_mu) + jnp.exp(0.5 * (x @ w_lv + b_lv)) * eps
    assert z.shape == (B, OUT) and z.dtype == jnp.float32
    assert bool(jnp.all(jnp.isfinite(z)))
    assert bool(jnp.allclose(z, z_ref, atol=1e-3, rtol=1e-3))

    # --- Test B: multi batch tile (2 TC-shardable steps) + forced K tiling + IN pad ---
    B2, IN2 = 64, 300
    x2 = jax.random.normal(k_x2, (B2, IN2), dtype=jnp.float32)
    w_mu2 = 0.05 * jax.random.normal(k_w2m, (IN2, OUT), dtype=jnp.float32)
    w_lv2 = 0.02 * jax.random.normal(k_w2l, (IN2, OUT), dtype=jnp.float32)
    eps2 = jax.random.normal(k_eps2, (B2, OUT), dtype=jnp.float32)

    z2 = jax.block_until_ready(
        vae_layer(x2, w_mu2, b_mu, w_lv2, b_lv, eps2,
                  weight_budget_bytes=256 * 1024))   # force grid_k > 1 at small IN
    z2_ref = (x2 @ w_mu2 + b_mu) + jnp.exp(0.5 * (x2 @ w_lv2 + b_lv)) * eps2
    assert bool(jnp.allclose(z2, z2_ref, atol=2e-3, rtol=2e-3))

    # --- Test C: sampling path (in-kernel PRNG; eps never touches HBM) ---
    z_s1 = jax.block_until_ready(vae_layer_sample(x2, w_mu2, b_mu, w_lv2, b_lv, seed=1))
    z_s2 = jax.block_until_ready(vae_layer_sample(x2, w_mu2, b_mu, w_lv2, b_lv, seed=2))
    assert z_s1.shape == (B2, OUT) and bool(jnp.all(jnp.isfinite(z_s1)))
    assert not bool(jnp.allclose(z_s1, z_s2))        # different seeds -> different draws
    mu_r = x2 @ w_mu2 + b_mu
    sig_r = jnp.exp(0.5 * (x2 @ w_lv2 + b_lv))
    eps_rec = (z_s1 - mu_r) / sig_r                  # recovered noise should be ~N(0,1)
    assert abs(float(jnp.mean(eps_rec))) < 0.15
    assert 0.8 < float(jnp.std(eps_rec)) < 1.2

    # --- Test D: opt-in bf16 weights (f32 accumulation), loose tolerance ---
    z_bf = jax.block_until_ready(
        vae_layer(x2, w_mu2, b_mu, w_lv2, b_lv, eps2, use_bf16_matmul=True))
    assert bool(jnp.allclose(z_bf, z2_ref, atol=1e-1, rtol=1e-1))

    print("KERNEL_OK")
</pallas_src>

<mosaic_0001>
module attributes {stable_mosaic.version = 11 : i64} {
  func.func @_vae_kernel_eps(%arg0: i32, %arg1: i32, %arg2: memref<8x32xf32, #tpu.memory_space<vmem>>, %arg3: memref<32x256xf32, #tpu.memory_space<vmem>>, %arg4: memref<1x256xf32, #tpu.memory_space<vmem>>, %arg5: memref<8x128xf32, #tpu.memory_space<vmem>>, %arg6: memref<8x128xf32, #tpu.memory_space<vmem>>, %arg7: memref<8x256xf32, #tpu.memory_space<vmem>>) attributes {dimension_semantics = [#tpu.dimension_semantics<parallel>, #tpu.dimension_semantics<arbitrary>], iteration_bounds = array<i64: 1, 1>, scalar_prefetch = 0 : i64, scratch_operands = 1 : i64, tpu.core_type = #tpu.core_type<tc>, window_params = [{transform_indices = @transform_0, window_bounds = array<i64: 8, 32>}, {transform_indices = @transform_1, window_bounds = array<i64: 32, 256>}, {pipeline_mode = #tpu.pipeline_mode<synchronous>, transform_indices = @transform_2, window_bounds = array<i64: 1, 256>}, {transform_indices = @transform_3, window_bounds = array<i64: 8, 128>}, {transform_indices = @transform_4, window_bounds = array<i64: 8, 128>}]} {
    %c0_i32 = arith.constant 0 : i32
    %0 = arith.cmpi eq, %arg1, %c0_i32 : i32
    %1 = arith.extui %0 : i1 to i32
    %c0_i32_0 = arith.constant 0 : i32
    %2 = arith.cmpi ne, %1, %c0_i32_0 : i32
    scf.if %2 {
      %cst_10 = arith.constant 0.000000e+00 : f32
      %12 = vector.broadcast %cst_10 : f32 to vector<8x256xf32>
      %c0_11 = arith.constant 0 : index
      %c0_12 = arith.constant 0 : index
      %13 = vector.load %arg7[%c0_11, %c0_12] : memref<8x256xf32, #tpu.memory_space<vmem>>, vector<8x256xf32>
      tpu.vector_store %arg7[%c0_11, %c0_12], %12 {strides = array<i32>} : memref<8x256xf32, #tpu.memory_space<vmem>>, vector<8x256xf32>,
    } else {
    }
    %c0 = arith.constant 0 : index
    %c0_1 = arith.constant 0 : index
    %3 = vector.load %arg2[%c0, %c0_1] : memref<8x32xf32, #tpu.memory_space<vmem>>, vector<8x32xf32>
    %c0_2 = arith.constant 0 : index
    %c0_3 = arith.constant 0 : index
    %4 = vector.load %arg7[%c0_2, %c0_3] : memref<8x256xf32, #tpu.memory_space<vmem>>, vector<8x256xf32>
    %c0_4 = arith.constant 0 : index
    %c0_5 = arith.constant 0 : index
    %5 = vector.load %arg3[%c0_4, %c0_5] : memref<32x256xf32, #tpu.memory_space<vmem>>, vector<32x256xf32>
    %cst = arith.constant dense<0.000000e+00> : vector<8x256xf32>
    %6 = tpu.matmul %3, %5, %cst {dimension_numbers = #tpu.dot_dimension_numbers<[1], [0], [0], [1], [0, 0, 1, 1], [], []>} : vector<8x32xf32>, vector<32x256xf32>, vector<8x256xf32> -> vector<8x256xf32>
    %7 = arith.addf %4, %6 : vector<8x256xf32>
    %c0_6 = arith.constant 0 : index
    %c0_7 = arith.constant 0 : index
    %8 = vector.load %arg7[%c0_6, %c0_7] : memref<8x256xf32, #tpu.memory_space<vmem>>, vector<8x256xf32>
    tpu.vector_store %arg7[%c0_6, %c0_7], %7 {strides = array<i32>} : memref<8x256xf32, #tpu.memory_space<vmem>>, vector<8x256xf32>,
    %c0_i32_8 = arith.constant 0 : i32
    %9 = arith.cmpi eq, %arg1, %c0_i32_8 : i32
    %10 = arith.extui %9 : i1 to i32
    %c0_i32_9 = arith.constant 0 : i32
    %11 = arith.cmpi ne, %10, %c0_i32_9 : i32
    scf.if %11 {
      %c0_10 = arith.constant 0 : index
      %c0_11 = arith.constant 0 : index
      %12 = vector.load %arg5[%c0_10, %c0_11] : memref<8x128xf32, #tpu.memory_space<vmem>>, vector<8x128xf32>
      %c0_12 = arith.constant 0 : index
      %c0_13 = arith.constant 0 : index
      %13 = vector.load %arg7[%c0_12, %c0_13] : memref<8x256xf32, #tpu.memory_space<vmem>>, vector<8x256xf32>
      %c0_14 = arith.constant 0 : index
      %c0_15 = arith.constant 0 : index
      %14 = vector.load %arg4[%c0_14, %c0_15] : memref<1x256xf32, #tpu.memory_space<vmem>>, vector<1x256xf32>
      %15 = vector.broadcast %14 : vector<1x256xf32> to vector<8x256xf32>
      %16 = arith.addf %13, %15 : vector<8x256xf32>
      %17 = vector.extract_strided_slice %16 {offsets = [0, 0], sizes = [8, 128], strides = [1, 1]} : vector<8x256xf32> to vector<8x128xf32>
      %18 = vector.extract_strided_slice %16 {offsets = [0, 128], sizes = [8, 128], strides = [1, 1]} : vector<8x256xf32> to vector<8x128xf32>
      %cst_16 = arith.constant 5.000000e-01 : f32
      %19 = vector.broadcast %cst_16 : f32 to vector<8x128xf32>
      %20 = arith.mulf %19, %18 : vector<8x128xf32>
      %21 = math.exp %20 : vector<8x128xf32>
      %22 = arith.mulf %21, %12 : vector<8x128xf32>
      %23 = arith.addf %17, %22 : vector<8x128xf32>
      %c0_17 = arith.constant 0 : index
      %c0_18 = arith.constant 0 : index
      %24 = vector.load %arg6[%c0_17, %c0_18] : memref<8x128xf32, #tpu.memory_space<vmem>>, vector<8x128xf32>
      tpu.vector_store %arg6[%c0_17, %c0_18], %23 {strides = array<i32>} : memref<8x128xf32, #tpu.memory_space<vmem>>, vector<8x128xf32>,
    } else {
    }
    return
  }
  func.func @transform_0(%arg0: i32, %arg1: i32) -> (i32, i32) {
    %c0_i32 = arith.constant 0 : i32
    return %arg0, %arg1 : i32, i32
  }
  func.func @transform_1(%arg0: i32, %arg1: i32) -> (i32, i32) {
    %c0_i32 = arith.constant 0 : i32
    %c0_i32_0 = arith.constant 0 : i32
    return %arg1, %c0_i32 : i32, i32
  }
  func.func @transform_2(%arg0: i32, %arg1: i32) -> (i32, i32) {
    %c0_i32 = arith.constant 0 : i32
    %c0_i32_0 = arith.constant 0 : i32
    %c0_i32_1 = arith.constant 0 : i32
    return %c0_i32, %c0_i32_0 : i32, i32
  }
  func.func @transform_3(%arg0: i32, %arg1: i32) -> (i32, i32) {
    %c0_i32 = arith.constant 0 : i32
    %c0_i32_0 = arith.constant 0 : i32
    return %arg0, %c0_i32 : i32, i32
  }
  func.func @transform_4(%arg0: i32, %arg1: i32) -> (i32, i32) {
    %c0_i32 = arith.constant 0 : i32
    %c0_i32_0 = arith.constant 0 : i32
    return %arg0, %c0_i32 : i32, i32
  }
}

</mosaic_0001>

<llo_original>
// kernel: tpu_custom_call.1
$region0: #{tpu_custom_call.1}
  #allocation0 [shape = 'u32[]', space=smem, size = 0x4, offset = 0x4, fixed_abs, tag = 'smem constant byte address 0x4 - core index']
  #allocation1 [shape = 'u32[144,128]{1,0:T(1,128)}', space=vmem, size = 0x12000, scoped, tag = 'internal scratch']
  #allocation2 [shape = 'f32[8,256]{1,0:T(8,128)}', space=vmem, size = 0x2000, scoped, tag = 'scratch operand']
  %s0 = inlined_call_operand.hbm [shape: f32[8,32], index: 0, kind: input, shape index: {}]
  %s1 = inlined_call_operand.hbm [shape: f32[32,256], index: 1, kind: input, shape index: {}]
  %s2 = inlined_call_operand.vmem [shape: f32[1,256], index: 2, kind: input, shape index: {}]
  %s3 = inlined_call_operand.vmem [shape: f32[8,128], index: 3, kind: input, shape index: {}]
  %s4 = inlined_call_operand.hbm [shape: f32[8,128], index: 4, kind: output, shape index: {}]
  %s5 = sld [smem:[#allocation0]]
  $region42: #{tpu_custom_call.1} parent=0
    _
  %s7 = ssub.s32 1, %s5
  %s8 = scalar_select 0, %s7, %s5
  $region1: #{tpu_custom_call.1} parent=0
    #allocation3 [shape = 'u8[4096]{0}', space=vmem, size = 0x1000, scoped, tag = 'input window, operand 0, single buffered']
    #allocation4 [shape = 's32[1]{0}', space=sflag, size = 0x4, scoped, tag = 'scoped memory for tpu_custom_call.1']
    #allocation5 [shape = 's32[1]{0}', space=sflag, size = 0x4, scoped, tag = 'scoped memory for tpu_custom_call.1']
    #allocation6 [shape = 'u8[32768]{0}', space=vmem, size = 0x8000, scoped, tag = 'input window, operand 1, single buffered']
    #allocation7 [shape = 's32[1]{0}', space=sflag, size = 0x4, scoped, tag = 'scoped memory for tpu_custom_call.1']
    #allocation8 [shape = 'u8[4096]{0}', space=vmem, size = 0x1000, scoped, tag = 'output window, operand 0, single buffered']
    %9 = vsyncpa [#allocation4], 0
    %10 = vsyncpa [#allocation7], 0
    %11 = vsyncpa [#allocation5], 0
    // Predicated region
    $region2: #{tpu_custom_call.1} parent=1 // pred_check
      _
    $region3: #{tpu_custom_call.1} parent=1 // pred_check_branch
      %13 = sbr.rel (0) target = $region5
    $region4: #{tpu_custom_call.1} parent=1 // pred_region
      %s15 = ssub.s32 128, 128
      %16 = vsyncadd [#allocation4], %s15
      %s18 = sshll.u32 [#allocation3], 4
      %s19 = int_to_ptr.vmem [resolvable:$true] %s18
      %21 = dma.hbm_to_vmem [thread:$0]  %s0, 128, %s19, [#allocation4]
    $region5: #{tpu_custom_call.1} parent=1 // pred_fallthru
      _
    // Predicated region
    $region6: #{tpu_custom_call.1} parent=1 // pred_check
      _
    $region7: #{tpu_custom_call.1} parent=1 // pred_check_branch
      %23 = sbr.rel (0) target = $region9
    $region8: #{tpu_custom_call.1} parent=1 // pred_region
      %s25 = ssub.s32 1024, 1024
      %26 = vsyncadd [#allocation7], %s25
      %s27 = sshll.u32 [#allocation6], 4
      %s28 = int_to_ptr.vmem [resolvable:$true] %s27
      %33 = dma.hbm_to_vmem [thread:$0]  %s1, 1024, %s28, [#allocation7], 256, 256, 16
    $region9: #{tpu_custom_call.1} parent=1 // pred_fallthru
      _
    // Predicated region
    $region10: #{tpu_custom_call.1} parent=1 // pred_check
      _
    $region11: #{tpu_custom_call.1} parent=1 // pred_check_branch
      %35 = sbr.rel (0) target = $region13
    $region12: #{tpu_custom_call.1} parent=1 // pred_region
      _
    $region13: #{tpu_custom_call.1} parent=1 // pred_fallthru
      _
    // Predicated region
    $region14: #{tpu_custom_call.1} parent=1 // pred_check
      _
    $region15: #{tpu_custom_call.1} parent=1 // pred_check_branch
      %37 = sbr.rel (0) target = $region17
    $region16: #{tpu_custom_call.1} parent=1 // pred_region
      _
    $region17: #{tpu_custom_call.1} parent=1 // pred_fallthru
      _
    // Predicated region
    $region18: #{tpu_custom_call.1} parent=1 // pred_check
      _
    $region19: #{tpu_custom_call.1} parent=1 // pred_check_branch
      %39 = sbr.rel (0) target = $region21
    $region20: #{tpu_custom_call.1} parent=1 // pred_region
      %40 = dma.done [#allocation4], 128
    $region21: #{tpu_custom_call.1} parent=1 // pred_fallthru
      _
    // Predicated region
    $region22: #{tpu_custom_call.1} parent=1 // pred_check
      _
    $region23: #{tpu_custom_call.1} parent=1 // pred_check_branch
      %42 = sbr.rel (0) target = $region25
    $region24: #{tpu_custom_call.1} parent=1 // pred_region
      %43 = dma.done [#allocation7], 1024
    $region25: #{tpu_custom_call.1} parent=1 // pred_fallthru
      _
    %p44 = scmp.eq.s32.totalorder 0, 0
    // Predicated region
    $region26: #{tpu_custom_call.1} parent=1 // pred_check
      %p45 = pneg %p44
    $region27: #{tpu_custom_call.1} parent=1 // pred_check_branch
      %47 = sbr.rel (%p45) target = $region29
    $region28: #{tpu_custom_call.1} parent=1 // pred_region
      %48 = vst [vmem:[#allocation2] sm:$0xff] 0.0
      %49 = vst [vmem:[#allocation2 + $0x8] sm:$0xff] 0.0
    $region29: #{tpu_custom_call.1} parent=1 // pred_fallthru
      _
    %v50 = vld [vmem:[#allocation3] sm:$0xff]
    %v51 = vld [vmem:[#allocation2] sm:$0xff]
    %v52 = vld [vmem:[#allocation2 + $0x8] sm:$0xff]
    %v53 = vld [vmem:[#allocation6] sm:$0xff]
    %v54 = vld [vmem:[#allocation6 + $0x8] sm:$0xff]
    %v55 = vld [vmem:[#allocation6 + $0x10] sm:$0xff]
    %v56 = vld [vmem:[#allocation6 + $0x18] sm:$0xff]
    %v57 = vld [vmem:[#allocation6 + $0x20] sm:$0xff]
    %v58 = vld [vmem:[#allocation6 + $0x28] sm:$0xff]
    %v59 = vld [vmem:[#allocation6 + $0x30] sm:$0xff]
    %v60 = vld [vmem:[#allocation6 + $0x38] sm:$0xff]
    %vm61 = vcmask 261120
    %v63 = vsel %vm61, %v50, 0
    %65 = vmatprep.subr.mxu0 %v54
    %66 = vmatpush1.msra.mxu0 %v53
    %67 = vmatprep.subr.mxu0 %v56
    %68 = vmatpush1.msra.mxu0 %v55
    %69 = vmatprep.subr.mxu0 %v58
    %70 = vmatpush1.msra.mxu0 %v57
    %71 = vmatprep.subr.mxu0 %v60
    %72 = vmatpush1.msra.mxu0 %v59
    %73 = vmatprep.subr.mxu0 0.0
    %74 = vmatpush1.msra.mxu0 0.0
    %75 = vmatprep.subr.mxu0 0.0
    %76 = vmatpush1.msra.mxu0 0.0
    %77 = vmatprep.subr.mxu0 0.0
    %78 = vmatpush1.msra.mxu0 0.0
    %79 = vmatprep.subr.mxu0 0.0
    %80 = vmatpush1.msra.mxu0 0.0
    %81 = vmatprep.subr.mxu0 0.0
    %82 = vmatpush1.msra.mxu0 0.0
    %83 = vmatprep.subr.mxu0 0.0
    %84 = vmatpush1.msra.mxu0 0.0
    %85 = vmatprep.subr.mxu0 0.0
    %86 = vmatpush1.msra.mxu0 0.0
    %87 = vmatprep.subr.mxu0 0.0
    %88 = vmatpush1.msra.mxu0 0.0
    %89 = vmatprep.subr.mxu0 0.0
    %90 = vmatpush1.msra.mxu0 0.0
    %91 = vmatprep.subr.mxu0 0.0
    %92 = vmatpush1.msra.mxu0 0.0
    %93 = vmatprep.subr.mxu0 0.0
    %94 = vmatpush1.msra.mxu0 0.0
    %95 = vmatprep.subr.mxu0 0.0
    %96 = vmatpush1.msra.mxu0 0.0
    %97 = vmatprep.subr.mxu0 0.0
    %98 = vmatpush1.msra.mxu0 0.0
    %99 = vmatprep.subr.mxu0 0.0
    %100 = vmatpush1.msra.mxu0 0.0
    %101 = vmatprep.subr.mxu0 0.0
    %102 = vmatpush1.msra.mxu0 0.0
    %103 = vmatprep.subr.mxu0 0.0
    %104 = vmatpush1.msra.mxu0 0.0
    %105 = vmatprep.subr.mxu0 0.0
    %106 = vmatpush1.msra.mxu0 0.0
    %107 = vmatprep.subr.mxu0 0.0
    %108 = vmatpush1.msra.mxu0 0.0
    %109 = vmatprep.subr.mxu0 0.0
    %110 = vmatpush1.msra.mxu0 0.0
    %111 = vmatprep.subr.mxu0 0.0
    %112 = vmatpush1.msra.mxu0 0.0
    %113 = vmatprep.subr.mxu0 0.0
    %114 = vmatpush1.msra.mxu0 0.0
    %115 = vmatprep.subr.mxu0 0.0
    %116 = vmatpush1.msra.mxu0 0.0
    %117 = vmatprep.subr.mxu0 0.0
    %118 = vmatpush1.msra.mxu0 0.0
    %119 = vmatprep.subr.mxu0 0.0
    %120 = vmatpush1.msra.mxu0 0.0
    %121 = vmatprep.subr.mxu0 0.0
    %122 = vmatpush1.msra.mxu0 0.0
    %123 = vmatprep.subr.mxu0 0.0
    %124 = vmatpush1.msra.mxu0 0.0
    %125 = vmatprep.subr.mxu0 0.0
    %126 = vmatpush1.msra.mxu0 0.0
    %127 = vmatprep.subr.mxu0 0.0
    %128 = vmatpush1.msra.mxu0 0.0
    %129 = vmatprep.mubr.f32.mxu0 0.0
    %130 = vmatmul.mubr.f32.gmra.mrb[0].mxu0 %v63
    %v131 = vpop.f32.mrb[0].mxu0
    %v132 = vadd.f32 0.0, %v131
    %v133 = vpop.f32.mrb[0].mxu0
    %v134 = vadd.f32 0.0, %v133
    %135 = vdwg.mxu0
    %v136 = vadd.f32 %v51, %v132
    %v137 = vadd.f32 %v52, %v134
    %138 = vst [vmem:[#allocation2] sm:$0xff] %v136
    %139 = vst [vmem:[#allocation2 + $0x8] sm:$0xff] %v137
    // Predicated region
    $region30: #{tpu_custom_call.1} parent=1 // pred_check
      %p140 = pneg %p44
    $region31: #{tpu_custom_call.1} parent=1 // pred_check_branch
      %142 = sbr.rel (%p140) target = $region33
    $region32: #{tpu_custom_call.1} parent=1 // pred_region
      %v143 = vld [vmem:[%s3] sm:$0xff]
      %v144 = vld [vmem:[#allocation2] sm:$0xff]
      %v145 = vld [vmem:[#allocation2 + $0x8] sm:$0xff]
      %v146 = vld [vmem:[%s2] sm:$0x3]
      %v148 = vlaneseq
      %v149 = vshrl.u32 %v148, 7
      %v150 = vsub.s32 0, %v149
      %v151 = vrot.slane %v146, %v150
      %v152 = vlaneseq
      %v153 = vshrl.u32 %v152, 7
      %v154 = vsub.s32 1, %v153
      %v155 = vrot.slane %v146, %v154
      %v158 = vadd.f32 %v144, %v151
      %v159 = vadd.f32 %v145, %v155
      %v160 = vmul.f32 %v159, 0.5
      %v161 = vmul.f32 %v160, 1.442695
      %v162 = vpow.pop %v161
      %v163 = vmul.f32 %v162, %v143
      %v164 = vadd.f32 %v158, %v163
      %165 = vst [vmem:[#allocation8] sm:$0xff] %v164
    $region33: #{tpu_custom_call.1} parent=1 // pred_fallthru
      _
    // Predicated region
    $region34: #{tpu_custom_call.1} parent=1 // pred_check
      _
    $region35: #{tpu_custom_call.1} parent=1 // pred_check_branch
      %167 = sbr.rel (0) target = $region37
    $region36: #{tpu_custom_call.1} parent=1 // pred_region
      %s169 = ssub.s32 128, 128
      %170 = vsyncadd [#allocation5], %s169
      %s172 = sshll.u32 [#allocation8], 4
      %s173 = int_to_ptr.vmem [resolvable:$true] %s172
      %175 = dma.vmem_to_hbm [thread:$0]  %s173, 128, %s4, [#allocation5]
    $region37: #{tpu_custom_call.1} parent=1 // pred_fallthru
      _
    // Predicated region
    $region38: #{tpu_custom_call.1} parent=1 // pred_check
      _
    $region39: #{tpu_custom_call.1} parent=1 // pred_check_branch
      %177 = sbr.rel (0) target = $region41
    $region40: #{tpu_custom_call.1} parent=1 // pred_region
      %178 = dma.done [#allocation5], 128
    $region41: #{tpu_custom_call.1} parent=1 // pred_fallthru
      _
    %179 = vsyncpa [#allocation4], 1
    %180 = vsyncpa [#allocation7], 1
    %181 = vsyncpa [#allocation5], 1

</llo_original>
